<compile_context>
chip_gen: v5e
topology: v5e:2x2
jax: 0.10.0
libtpu: 0.0.40
codegen_flags: <defaults>
</compile_context>

<pallas_src>
import functools

import jax
import jax.numpy as jnp
import numpy as np
from jax.experimental import pallas as pl
from jax.experimental.pallas import tpu as pltpu

BN_EPSILON = 1e-5


def _conv_wsbn_kernel(x_ref, w_ref, scale_ref, off_ref, mask_ref, o_ref, col_ref,
                      *, H, W, Cin, Cout, K, pad, bt):
    """Processes `bt` batch elements per grid step.

    x_ref:     (bt, Cin, H*W)        NCHW-flat input block (lane-dense last dim)
    w_ref:     (Cout, K*K*Cin)       bf16 conv weight, im2col row order (tap-major)
    scale_ref: (Cout, 1)             f32 WSBN scale  = gamma / sqrt(var + eps)
    off_ref:   (Cout, 1)             f32 WSBN offset = beta - mean * scale
    mask_ref:  (K*K, H*W)            f32 0/1 halo-validity mask per tap
    o_ref:     (bt, Cout, H*W)       NCHW-flat output block
    col_ref:   (K*K*Cin, bt*H*W)     bf16 VMEM scratch: channel-major im2col RHS
    """
    HW = H * W
    taps = [(kh, kw) for kh in range(K) for kw in range(K)]
    m_all = mask_ref[...]                       # hoisted: loaded once per grid step

    # ---- im2col: build (K*K*Cin, bt*HW) with lane rolls + masks (no padded copy) ----
    for i in range(bt):
        xi = x_ref[i].astype(jnp.float32)       # (Cin, HW), loaded once per image
        for t, (kh, kw) in enumerate(taps):
            dh, dw = kh - pad, kw - pad
            shift = (-(dh * W + dw)) % HW       # col[c, p] = x[c, p + dh*W + dw]
            v = xi if shift == 0 else pltpu.roll(xi, shift, axis=1)
            if dh != 0 or dw != 0:              # zero out wrapped / out-of-image taps
                v = v * m_all[t:t + 1, :]
            col_ref[t * Cin:(t + 1) * Cin, i * HW:(i + 1) * HW] = v.astype(jnp.bfloat16)

    # ---- single MXU contraction for all bt images: (Cout,KKC) @ (KKC, bt*HW) ----
    acc = jnp.dot(w_ref[...], col_ref[...], preferred_element_type=jnp.float32)

    # ---- fused eval-mode WSBN epilogue in f32 (scale kept out of the bf16 weight) ----
    y = (acc * scale_ref[...] + off_ref[...]).astype(o_ref.dtype)   # (Cout, bt*HW)

    # Per-image lane-dense (Cout, HW) stores at 256-lane aligned offsets.
    for i in range(bt):
        o_ref[i] = y[:, i * HW:(i + 1) * HW]


def _pick_batch_tile(B, max_bt=16):
    """Largest divisor of B (<= max_bt) that keeps the grid at >= 2 steps.

    A >=2-step grid restores double-buffered prefetch/writeback overlap and lets
    the "parallel" batch axis shard across v7x's two TensorCores. Per-step VMEM
    footprint is tiny here (<1 MiB even at bt=16), so larger bt simply amortizes
    the ~0.35us per-step overhead for large batches.
    """
    best = 1
    for cand in range(1, min(B, max_bt) + 1):
        if B % cand == 0 and B // cand >= 2:
            best = cand
    return best


def dynamic_conv_wsbn_relu(x_nchw, conv_weight_full, wsbn_params, previous_node_id,
                           kernel_size):
    """x_nchw: (B, Cin, H, W). conv_weight_full: (Cout, Cin_full, K, K).

    wsbn_params: dict of per-possible-input-id arrays (num_possible_inputs, Cout):
      'gamma', 'beta', 'running_mean', 'running_var'.
    Returns (B, Cout, H, W), matching the PyTorch module output (conv + WSBN,
    no ReLU / channel-dropout in the overridden forward).
    """
    B, Cin, H, W = x_nchw.shape
    Cout, Cin_full, K, _ = conv_weight_full.shape
    assert K == kernel_size and Cin <= Cin_full
    pad = 1 if kernel_size == 3 else 0
    HW = H * W
    KKC = K * K * Cin

    # ---- glue (plain JAX, all tiny): dynamic weight narrowing + BN params ----
    # DynamicConv2d 'fixed' channel_fn: take the first Cin input-channel slices.
    w = conv_weight_full[:, :Cin, :, :]                              # (Cout, Cin, K, K)
    # (Cout, K*K*Cin) with rows matching the col layout: row = (kh*K + kw)*Cin + c.
    w_mat = jnp.transpose(w, (0, 2, 3, 1)).reshape(Cout, KKC).astype(jnp.bfloat16)

    gamma = wsbn_params["gamma"][previous_node_id].astype(jnp.float32)       # (Cout,)
    beta = wsbn_params["beta"][previous_node_id].astype(jnp.float32)
    mean = wsbn_params["running_mean"][previous_node_id].astype(jnp.float32)
    var = wsbn_params["running_var"][previous_node_id].astype(jnp.float32)
    scale = (gamma / jnp.sqrt(var + BN_EPSILON)).reshape(Cout, 1)            # f32
    offset = (beta - mean * scale[:, 0]).reshape(Cout, 1)                    # f32

    # Per-tap halo-validity masks over the flat H*W axis (host-precomputed 0/1).
    hh = np.arange(H)[:, None]
    ww = np.arange(W)[None, :]
    masks = []
    for kh in range(K):
        for kw in range(K):
            dh, dw = kh - pad, kw - pad
            valid = (hh + dh >= 0) & (hh + dh < H) & (ww + dw >= 0) & (ww + dw < W)
            masks.append(valid.reshape(HW))
    mask_arr = jnp.asarray(np.stack(masks).astype(np.float32))               # (K*K, HW)

    # NCHW -> NCHW-flat is a free, contiguous reshape: NO transpose / pad / cast
    # pre-pass on the activations (halo handled in-kernel with roll + mask).
    x_flat = x_nchw.reshape(B, Cin, HW)

    bt = _pick_batch_tile(B)
    kernel = functools.partial(_conv_wsbn_kernel,
                               H=H, W=W, Cin=Cin, Cout=Cout, K=K, pad=pad, bt=bt)

    out_flat = pl.pallas_call(
        kernel,
        # Output kept in the input dtype to match the module; on v5e a bf16 output
        # would halve writeback bytes if downstream accepts it.
        out_shape=jax.ShapeDtypeStruct((B, Cout, HW), x_nchw.dtype),
        grid_spec=pltpu.PrefetchScalarGridSpec(
            num_scalar_prefetch=0,
            grid=(B // bt,),
            in_specs=[
                pl.BlockSpec((bt, Cin, HW), lambda b: (b, 0, 0)),
                pl.BlockSpec((Cout, KKC), lambda b: (0, 0)),
                pl.BlockSpec((Cout, 1), lambda b: (0, 0)),
                pl.BlockSpec((Cout, 1), lambda b: (0, 0)),
                pl.BlockSpec((K * K, HW), lambda b: (0, 0)),
            ],
            out_specs=pl.BlockSpec((bt, Cout, HW), lambda b: (b, 0, 0)),
            scratch_shapes=[pltpu.VMEM((KKC, bt * HW), jnp.bfloat16)],
        ),
        compiler_params=pltpu.CompilerParams(dimension_semantics=("parallel",)),
    )(x_flat, w_mat, scale, offset, mask_arr)

    # NCHW-flat -> NCHW is a free contiguous reshape (no transpose, no extra copy).
    return out_flat.reshape(B, Cout, H, W)


def _reference(x_nchw, conv_weight_full, wsbn_params, previous_node_id, kernel_size):
    """Plain-JAX f32 reference for correctness checking."""
    B, Cin, H, W = x_nchw.shape
    pad = 1 if kernel_size == 3 else 0
    w = conv_weight_full[:, :Cin, :, :]
    y = jax.lax.conv_general_dilated(
        x_nchw, w, window_strides=(1, 1), padding=[(pad, pad), (pad, pad)],
        dimension_numbers=("NCHW", "OIHW", "NCHW"))
    g = wsbn_params["gamma"][previous_node_id][None, :, None, None]
    b = wsbn_params["beta"][previous_node_id][None, :, None, None]
    m = wsbn_params["running_mean"][previous_node_id][None, :, None, None]
    v = wsbn_params["running_var"][previous_node_id][None, :, None, None]
    return (y - m) / jnp.sqrt(v + BN_EPSILON) * g + b


if __name__ == "__main__":
    key = jax.random.PRNGKey(0)
    k_x, k_w3, k_w1, k_g, k_b, k_m, k_v = jax.random.split(key, 7)

    # Module config: full_input_size=6, full_output_size=8, curr_vtx_id=2
    # -> num_possible_inputs = 2**2 - 1 = 3.
    full_input_size, full_output_size = 6, 8
    num_possible_inputs = 3
    previous_node_id = 1

    # Actual input has fewer channels than full_input_size (dynamic conv narrows weight).
    B, Cin, H, W = 2, 4, 16, 16
    x = jax.random.normal(k_x, (B, Cin, H, W), jnp.float32)

    wsbn_params = {
        "gamma": 1.0 + 0.1 * jax.random.normal(
            k_g, (num_possible_inputs, full_output_size), jnp.float32),
        "beta": 0.1 * jax.random.normal(
            k_b, (num_possible_inputs, full_output_size), jnp.float32),
        "running_mean": 0.05 * jax.random.normal(
            k_m, (num_possible_inputs, full_output_size), jnp.float32),
        "running_var": 1.0 + 0.1 * jax.nn.softplus(jax.random.normal(
            k_v, (num_possible_inputs, full_output_size), jnp.float32)),
    }
    # TODO(synk): training-mode WSBN (batch-stat computation / running-stat update)
    # is not implemented; the kernel fuses eval-mode running-stat normalization.

    # ---- kernel_size = 3 path (padding = 1) ----
    conv_w3 = 0.1 * jax.random.normal(
        k_w3, (full_output_size, full_input_size, 3, 3), jnp.float32)
    out3 = jax.block_until_ready(
        dynamic_conv_wsbn_relu(x, conv_w3, wsbn_params, previous_node_id, 3))
    ref3 = _reference(x, conv_w3, wsbn_params, previous_node_id, 3)
    # bf16 conv operands (f32 accumulate + f32 BN epilogue) vs f32 reference.
    np.testing.assert_allclose(np.asarray(out3), np.asarray(ref3), atol=5e-2, rtol=5e-2)

    # ---- kernel_size = 1 path (padding = 0, single tap) ----
    conv_w1 = 0.1 * jax.random.normal(
        k_w1, (full_output_size, full_input_size, 1, 1), jnp.float32)
    out1 = jax.block_until_ready(
        dynamic_conv_wsbn_relu(x, conv_w1, wsbn_params, previous_node_id, 1))
    ref1 = _reference(x, conv_w1, wsbn_params, previous_node_id, 1)
    np.testing.assert_allclose(np.asarray(out1), np.asarray(ref1), atol=5e-2, rtol=5e-2)

    print("KERNEL_OK")
</pallas_src>

<mosaic_0001>
module attributes {stable_mosaic.version = 11 : i64} {
  func.func @_conv_wsbn_kernel(%arg0: i32, %arg1: memref<1x4x256xf32, #tpu.memory_space<vmem>>, %arg2: memref<8x36xbf16, #tpu.memory_space<vmem>>, %arg3: memref<8x1xf32, #tpu.memory_space<vmem>>, %arg4: memref<8x1xf32, #tpu.memory_space<vmem>>, %arg5: memref<9x256xf32, #tpu.memory_space<vmem>>, %arg6: memref<1x8x256xf32, #tpu.memory_space<vmem>>, %arg7: memref<36x256xbf16, #tpu.memory_space<vmem>>) attributes {dimension_semantics = [#tpu.dimension_semantics<parallel>], iteration_bounds = array<i64: 2>, scalar_prefetch = 0 : i64, scratch_operands = 1 : i64, tpu.core_type = #tpu.core_type<tc>, window_params = [{transform_indices = @transform_0, window_bounds = array<i64: 1, 4, 256>}, {pipeline_mode = #tpu.pipeline_mode<synchronous>, transform_indices = @transform_1, window_bounds = array<i64: 8, 36>}, {pipeline_mode = #tpu.pipeline_mode<synchronous>, transform_indices = @transform_2, window_bounds = array<i64: 8, 1>}, {pipeline_mode = #tpu.pipeline_mode<synchronous>, transform_indices = @transform_3, window_bounds = array<i64: 8, 1>}, {pipeline_mode = #tpu.pipeline_mode<synchronous>, transform_indices = @transform_4, window_bounds = array<i64: 9, 256>}, {transform_indices = @transform_5, window_bounds = array<i64: 1, 8, 256>}]} {
    %c0 = arith.constant 0 : index
    %c0_0 = arith.constant 0 : index
    %0 = vector.load %arg5[%c0, %c0_0] : memref<9x256xf32, #tpu.memory_space<vmem>>, vector<9x256xf32>
    %c0_1 = arith.constant 0 : index
    %c0_2 = arith.constant 0 : index
    %c0_3 = arith.constant 0 : index
    %1 = vector.load %arg1[%c0_1, %c0_2, %c0_3] : memref<1x4x256xf32, #tpu.memory_space<vmem>>, vector<1x4x256xf32>
    %2 = vector.shape_cast %1 : vector<1x4x256xf32> to vector<4x256xf32>
    %c17_i32 = arith.constant 17 : i32
    %3 = tpu.dynamic_rotate %2 by %c17_i32 dim 1 : vector<4x256xf32>, i32 -> vector<4x256xf32>
    %4 = vector.extract_strided_slice %0 {offsets = [0, 0], sizes = [1, 256], strides = [1, 1]} : vector<9x256xf32> to vector<1x256xf32>
    %5 = vector.broadcast %4 : vector<1x256xf32> to vector<4x256xf32>
    %6 = arith.mulf %3, %5 : vector<4x256xf32>
    %7 = arith.truncf %6 : vector<4x256xf32> to vector<4x256xbf16>
    %c0_4 = arith.constant 0 : index
    %c0_5 = arith.constant 0 : index
    %8 = vector.load %arg7[%c0_4, %c0_5] : memref<36x256xbf16, #tpu.memory_space<vmem>>, vector<4x256xbf16>
    tpu.vector_store %arg7[%c0_4, %c0_5], %7 {strides = array<i32>} : memref<36x256xbf16, #tpu.memory_space<vmem>>, vector<4x256xbf16>,
    %c16_i32 = arith.constant 16 : i32
    %9 = tpu.dynamic_rotate %2 by %c16_i32 dim 1 : vector<4x256xf32>, i32 -> vector<4x256xf32>
    %10 = vector.extract_strided_slice %0 {offsets = [1, 0], sizes = [1, 256], strides = [1, 1]} : vector<9x256xf32> to vector<1x256xf32>
    %11 = vector.broadcast %10 : vector<1x256xf32> to vector<4x256xf32>
    %12 = arith.mulf %9, %11 : vector<4x256xf32>
    %13 = arith.truncf %12 : vector<4x256xf32> to vector<4x256xbf16>
    %c4 = arith.constant 4 : index
    %c0_6 = arith.constant 0 : index
    %14 = vector.load %arg7[%c4, %c0_6] : memref<36x256xbf16, #tpu.memory_space<vmem>>, vector<4x256xbf16>
    tpu.vector_store %arg7[%c4, %c0_6], %13 {strides = array<i32>} : memref<36x256xbf16, #tpu.memory_space<vmem>>, vector<4x256xbf16>,
    %c15_i32 = arith.constant 15 : i32
    %15 = tpu.dynamic_rotate %2 by %c15_i32 dim 1 : vector<4x256xf32>, i32 -> vector<4x256xf32>
    %16 = vector.extract_strided_slice %0 {offsets = [2, 0], sizes = [1, 256], strides = [1, 1]} : vector<9x256xf32> to vector<1x256xf32>
    %17 = vector.broadcast %16 : vector<1x256xf32> to vector<4x256xf32>
    %18 = arith.mulf %15, %17 : vector<4x256xf32>
    %19 = arith.truncf %18 : vector<4x256xf32> to vector<4x256xbf16>
    %c8 = arith.constant 8 : index
    %c0_7 = arith.constant 0 : index
    %20 = vector.load %arg7[%c8, %c0_7] : memref<36x256xbf16, #tpu.memory_space<vmem>>, vector<4x256xbf16>
    tpu.vector_store %arg7[%c8, %c0_7], %19 {strides = array<i32>} : memref<36x256xbf16, #tpu.memory_space<vmem>>, vector<4x256xbf16>,
    %c1_i32 = arith.constant 1 : i32
    %21 = tpu.dynamic_rotate %2 by %c1_i32 dim 1 : vector<4x256xf32>, i32 -> vector<4x256xf32>
    %22 = vector.extract_strided_slice %0 {offsets = [3, 0], sizes = [1, 256], strides = [1, 1]} : vector<9x256xf32> to vector<1x256xf32>
    %23 = vector.broadcast %22 : vector<1x256xf32> to vector<4x256xf32>
    %24 = arith.mulf %21, %23 : vector<4x256xf32>
    %25 = arith.truncf %24 : vector<4x256xf32> to vector<4x256xbf16>
    %c12 = arith.constant 12 : index
    %c0_8 = arith.constant 0 : index
    %26 = vector.load %arg7[%c12, %c0_8] : memref<36x256xbf16, #tpu.memory_space<vmem>>, vector<4x256xbf16>
    tpu.vector_store %arg7[%c12, %c0_8], %25 {strides = array<i32>} : memref<36x256xbf16, #tpu.memory_space<vmem>>, vector<4x256xbf16>,
    %27 = arith.truncf %2 : vector<4x256xf32> to vector<4x256xbf16>
    %c16 = arith.constant 16 : index
    %c0_9 = arith.constant 0 : index
    %28 = vector.load %arg7[%c16, %c0_9] : memref<36x256xbf16, #tpu.memory_space<vmem>>, vector<4x256xbf16>
    tpu.vector_store %arg7[%c16, %c0_9], %27 {strides = array<i32>} : memref<36x256xbf16, #tpu.memory_space<vmem>>, vector<4x256xbf16>,
    %c255_i32 = arith.constant 255 : i32
    %29 = tpu.dynamic_rotate %2 by %c255_i32 dim 1 : vector<4x256xf32>, i32 -> vector<4x256xf32>
    %30 = vector.extract_strided_slice %0 {offsets = [5, 0], sizes = [1, 256], strides = [1, 1]} : vector<9x256xf32> to vector<1x256xf32>
    %31 = vector.broadcast %30 : vector<1x256xf32> to vector<4x256xf32>
    %32 = arith.mulf %29, %31 : vector<4x256xf32>
    %33 = arith.truncf %32 : vector<4x256xf32> to vector<4x256xbf16>
    %c20 = arith.constant 20 : index
    %c0_10 = arith.constant 0 : index
    %34 = vector.load %arg7[%c20, %c0_10] : memref<36x256xbf16, #tpu.memory_space<vmem>>, vector<4x256xbf16>
    tpu.vector_store %arg7[%c20, %c0_10], %33 {strides = array<i32>} : memref<36x256xbf16, #tpu.memory_space<vmem>>, vector<4x256xbf16>,
    %c241_i32 = arith.constant 241 : i32
    %35 = tpu.dynamic_rotate %2 by %c241_i32 dim 1 : vector<4x256xf32>, i32 -> vector<4x256xf32>
    %36 = vector.extract_strided_slice %0 {offsets = [6, 0], sizes = [1, 256], strides = [1, 1]} : vector<9x256xf32> to vector<1x256xf32>
    %37 = vector.broadcast %36 : vector<1x256xf32> to vector<4x256xf32>
    %38 = arith.mulf %35, %37 : vector<4x256xf32>
    %39 = arith.truncf %38 : vector<4x256xf32> to vector<4x256xbf16>
    %c24 = arith.constant 24 : index
    %c0_11 = arith.constant 0 : index
    %40 = vector.load %arg7[%c24, %c0_11] : memref<36x256xbf16, #tpu.memory_space<vmem>>, vector<4x256xbf16>
    tpu.vector_store %arg7[%c24, %c0_11], %39 {strides = array<i32>} : memref<36x256xbf16, #tpu.memory_space<vmem>>, vector<4x256xbf16>,
    %c240_i32 = arith.constant 240 : i32
    %41 = tpu.dynamic_rotate %2 by %c240_i32 dim 1 : vector<4x256xf32>, i32 -> vector<4x256xf32>
    %42 = vector.extract_strided_slice %0 {offsets = [7, 0], sizes = [1, 256], strides = [1, 1]} : vector<9x256xf32> to vector<1x256xf32>
    %43 = vector.broadcast %42 : vector<1x256xf32> to vector<4x256xf32>
    %44 = arith.mulf %41, %43 : vector<4x256xf32>
    %45 = arith.truncf %44 : vector<4x256xf32> to vector<4x256xbf16>
    %c28 = arith.constant 28 : index
    %c0_12 = arith.constant 0 : index
    %46 = vector.load %arg7[%c28, %c0_12] : memref<36x256xbf16, #tpu.memory_space<vmem>>, vector<4x256xbf16>
    tpu.vector_store %arg7[%c28, %c0_12], %45 {strides = array<i32>} : memref<36x256xbf16, #tpu.memory_space<vmem>>, vector<4x256xbf16>,
    %c239_i32 = arith.constant 239 : i32
    %47 = tpu.dynamic_rotate %2 by %c239_i32 dim 1 : vector<4x256xf32>, i32 -> vector<4x256xf32>
    %48 = vector.extract_strided_slice %0 {offsets = [8, 0], sizes = [1, 256], strides = [1, 1]} : vector<9x256xf32> to vector<1x256xf32>
    %49 = vector.broadcast %48 : vector<1x256xf32> to vector<4x256xf32>
    %50 = arith.mulf %47, %49 : vector<4x256xf32>
    %51 = arith.truncf %50 : vector<4x256xf32> to vector<4x256xbf16>
    %c32 = arith.constant 32 : index
    %c0_13 = arith.constant 0 : index
    %52 = vector.load %arg7[%c32, %c0_13] : memref<36x256xbf16, #tpu.memory_space<vmem>>, vector<4x256xbf16>
    tpu.vector_store %arg7[%c32, %c0_13], %51 {strides = array<i32>} : memref<36x256xbf16, #tpu.memory_space<vmem>>, vector<4x256xbf16>,
    %c0_14 = arith.constant 0 : index
    %c0_15 = arith.constant 0 : index
    %53 = vector.load %arg2[%c0_14, %c0_15] : memref<8x36xbf16, #tpu.memory_space<vmem>>, vector<8x36xbf16>
    %c0_16 = arith.constant 0 : index
    %c0_17 = arith.constant 0 : index
    %54 = vector.load %arg7[%c0_16, %c0_17] : memref<36x256xbf16, #tpu.memory_space<vmem>>, vector<36x256xbf16>
    %cst = arith.constant dense<0.000000e+00> : vector<8x256xf32>
    %55 = tpu.matmul %53, %54, %cst {dimension_numbers = #tpu.dot_dimension_numbers<[1], [0], [0], [1], [0, 0, 1, 1], [], []>} : vector<8x36xbf16>, vector<36x256xbf16>, vector<8x256xf32> -> vector<8x256xf32>
    %c0_18 = arith.constant 0 : index
    %c0_19 = arith.constant 0 : index
    %56 = vector.load %arg3[%c0_18, %c0_19] : memref<8x1xf32, #tpu.memory_space<vmem>>, vector<8x1xf32>
    %57 = vector.broadcast %56 : vector<8x1xf32> to vector<8x256xf32>
    %58 = arith.mulf %55, %57 : vector<8x256xf32>
    %c0_20 = arith.constant 0 : index
    %c0_21 = arith.constant 0 : index
    %59 = vector.load %arg4[%c0_20, %c0_21] : memref<8x1xf32, #tpu.memory_space<vmem>>, vector<8x1xf32>
    %60 = vector.broadcast %59 : vector<8x1xf32> to vector<8x256xf32>
    %61 = arith.addf %58, %60 : vector<8x256xf32>
    %c0_22 = arith.constant 0 : index
    %c0_23 = arith.constant 0 : index
    %c0_24 = arith.constant 0 : index
    %62 = vector.load %arg6[%c0_22, %c0_23, %c0_24] : memref<1x8x256xf32, #tpu.memory_space<vmem>>, vector<1x8x256xf32>
    %63 = vector.shape_cast %62 : vector<1x8x256xf32> to vector<8x256xf32>
    %64 = vector.shape_cast %61 : vector<8x256xf32> to vector<1x8x256xf32>
    tpu.vector_store %arg6[%c0_22, %c0_23, %c0_24], %64 {strides = array<i32>} : memref<1x8x256xf32, #tpu.memory_space<vmem>>, vector<1x8x256xf32>,
    return
  }
  func.func @transform_0(%arg0: i32) -> (i32, i32, i32) {
    %c0_i32 = arith.constant 0 : i32
    %c0_i32_0 = arith.constant 0 : i32
    %c0_i32_1 = arith.constant 0 : i32
    return %arg0, %c0_i32, %c0_i32_0 : i32, i32, i32
  }
  func.func @transform_1(%arg0: i32) -> (i32, i32) {
    %c0_i32 = arith.constant 0 : i32
    %c0_i32_0 = arith.constant 0 : i32
    %c0_i32_1 = arith.constant 0 : i32
    return %c0_i32, %c0_i32_0 : i32, i32
  }
  func.func @transform_2(%arg0: i32) -> (i32, i32) {
    %c0_i32 = arith.constant 0 : i32
    %c0_i32_0 = arith.constant 0 : i32
    %c0_i32_1 = arith.constant 0 : i32
    return %c0_i32, %c0_i32_0 : i32, i32
  }
  func.func @transform_3(%arg0: i32) -> (i32, i32) {
    %c0_i32 = arith.constant 0 : i32
    %c0_i32_0 = arith.constant 0 : i32
    %c0_i32_1 = arith.constant 0 : i32
    return %c0_i32, %c0_i32_0 : i32, i32
  }
  func.func @transform_4(%arg0: i32) -> (i32, i32) {
    %c0_i32 = arith.constant 0 : i32
    %c0_i32_0 = arith.constant 0 : i32
    %c0_i32_1 = arith.constant 0 : i32
    return %c0_i32, %c0_i32_0 : i32, i32
  }
  func.func @transform_5(%arg0: i32) -> (i32, i32, i32) {
    %c0_i32 = arith.constant 0 : i32
    %c0_i32_0 = arith.constant 0 : i32
    %c0_i32_1 = arith.constant 0 : i32
    return %arg0, %c0_i32, %c0_i32_0 : i32, i32, i32
  }
}

</mosaic_0001>

<llo_original>
// kernel: tpu_custom_call.1
$region0: #{tpu_custom_call.1}
  #allocation0 [shape = 'u32[]', space=smem, size = 0x4, offset = 0x4, fixed_abs, tag = 'smem constant byte address 0x4 - core index']
  #allocation1 [shape = 'u32[72,128]{1,0:T(1,128)}', space=vmem, size = 0x9000, scoped, tag = 'internal scratch']
  #allocation2 [shape = 'bf16[36,256]{1,0:T(8,128)(2,1)}', space=vmem, size = 0x5000, scoped, tag = 'scratch operand']
  %s0 = inlined_call_operand.vmem [shape: f32[2,4,256], index: 0, kind: input, shape index: {}]
  %s1 = inlined_call_operand.hbm [shape: bf16[8,36], index: 1, kind: input, shape index: {}]
  %s2 = inlined_call_operand.vmem [shape: f32[8,1], index: 2, kind: input, shape index: {}]
  %s3 = inlined_call_operand.vmem [shape: f32[8,1], index: 3, kind: input, shape index: {}]
  %s4 = inlined_call_operand.hbm [shape: f32[9,256], index: 4, kind: input, shape index: {}]
  %s5 = inlined_call_operand.hbm [shape: f32[2,8,256], index: 5, kind: output, shape index: {}]
  %s6 = sld [smem:[#allocation0]]
  $region61: #{tpu_custom_call.1} parent=0
    _
  %s8 = ssub.s32 1, %s6
  %s9 = scalar_select 0, %s8, %s6
  $region1: #{tpu_custom_call.1} parent=0
    #allocation3 [shape = 'u8[2048]{0}', space=vmem, size = 0x800, scoped, tag = 'input window, operand 1, single buffered']
    #allocation4 [shape = 's32[2]{0}', space=sflag, size = 0x8, scoped, tag = 'scoped memory for tpu_custom_call.1']
    #allocation5 [shape = 's32[2]{0}', space=sflag, size = 0x8, scoped, tag = 'scoped memory for tpu_custom_call.1']
    #allocation6 [shape = 'u8[16384]{0}', space=vmem, size = 0x4000, scoped, tag = 'input window, operand 4, single buffered']
    #allocation7 [shape = 's32[1]{0}', space=sflag, size = 0x4, scoped, tag = 'scoped memory for tpu_custom_call.1']
    #allocation8 [shape = 'u8[16384]{0}', space=vmem, size = 0x4000, scoped, tag = 'output window, operand 0']
    %10 = vsyncpa [#allocation4], 0
    %11 = vsyncpa [#allocation7], 0
    %12 = vsyncpa [#allocation5], 0
    %s13 = scalar_lea.sflag [#allocation5], 1
    %14 = vsyncpa %s13, 0
    loop: start=0, step=1, limit=4
    $region2: #{tpu_custom_call.1} parent=1 // loop_pre_header
      _
    $region3: #{tpu_custom_call.1} parent=1 // loop_header
      %s16 = sphi 0, %s20
      %p17 = scmp.ge.s32.totalorder %s16, 4
      %s26 = sphi 0, %s28
      %s29 = sphi 0, %s26
      %s30 = sphi 0, %s29
      %s46 = sphi 0, %s30
      %s50 = sphi 0, %s50
      %s52 = sphi 0, %s50
      %s53 = sphi 0, %s52
      %s67 = sphi 0, %s53
      %s71 = sphi 0, %s71
      %s73 = sphi 0, %s71
      %s74 = sphi 0, %s73
      %s88 = sphi 0, %s74
      %s92 = sphi 0, %s92
      %s94 = sphi 0, %s92
      %s95 = sphi 0, %s94
      %s109 = sphi 0, %s95
      %s113 = sphi 0, %s113
      %s115 = sphi 0, %s113
      %s116 = sphi 0, %s115
      %s130 = sphi 0, %s116
      %s136 = sphi 0, %s138
      %s139 = sphi 0, %s136
      %s140 = sphi 0, %s139
      %s156 = sphi 0, %s140
    $region4: #{tpu_custom_call.1} parent=1 // loop_header_branch
      %19 = sbr.rel (%p17) target = $region8
    $region5: #{tpu_custom_call.1} parent=1 // loop_body
      %s21 = ssub.s32 %s16, 1
      %s22 = ssub.s32 %s16, 2
      %s23 = sadd.s32 %s16, 1
      %s24 = ssub.s32 %s16, %s23
      %p25 = scmp.eq.s32.totalorder %s24, 0
      %s27 = sadd.s32 %s26, 1
      %s28 = scalar_select %p25, %s26, %s27
      %p31 = pneg %p25
      %p32 = scmp.eq.s32.totalorder %s16, 1
      %p33 = por %p31, %p32
      %p34 = scmp.ne.s32.totalorder %s26, %s29
      %p35 = scmp.eq.s32.totalorder %s16, 0
      %p36 = por %p34, %p35
      %p37 = scmp.ne.s32.totalorder %s26, %s29
      %p38 = scmp.eq.s32.totalorder %s21, 1
      %p39 = por %p37, %p38
      %p40 = scmp.ne.s32.totalorder %s29, %s30
      %p41 = scmp.eq.s32.totalorder %s21, 0
      %p42 = por %p40, %p41
      %p43 = scmp.ne.s32.totalorder %s29, %s30
      %p44 = scmp.eq.s32.totalorder %s22, 1
      %p45 = por %p43, %p44
      %p47 = scmp.ne.s32.totalorder %s30, %s46
      %p48 = scmp.eq.s32.totalorder %s22, 0
      %p49 = por %p47, %p48
      %s51 = sadd.s32 %s50, 1
      %p54 = scmp.eq.s32.totalorder %s16, 1
      %p55 = scmp.ne.s32.totalorder %s50, %s52
      %p56 = scmp.eq.s32.totalorder %s16, 0
      %p57 = por %p55, %p56
      %p58 = scmp.ne.s32.totalorder %s50, %s52
      %p59 = scmp.eq.s32.totalorder %s21, 1
      %p60 = por %p58, %p59
      %p61 = scmp.ne.s32.totalorder %s52, %s53
      %p62 = scmp.eq.s32.totalorder %s21, 0
      %p63 = por %p61, %p62
      %p64 = scmp.ne.s32.totalorder %s52, %s53
      %p65 = scmp.eq.s32.totalorder %s22, 1
      %p66 = por %p64, %p65
      %p68 = scmp.ne.s32.totalorder %s53, %s67
      %p69 = scmp.eq.s32.totalorder %s22, 0
      %p70 = por %p68, %p69
      %s72 = sadd.s32 %s71, 1
      %p75 = scmp.eq.s32.totalorder %s16, 1
      %p76 = scmp.ne.s32.totalorder %s71, %s73
      %p77 = scmp.eq.s32.totalorder %s16, 0
      %p78 = por %p76, %p77
      %p79 = scmp.ne.s32.totalorder %s71, %s73
      %p80 = scmp.eq.s32.totalorder %s21, 1
      %p81 = por %p79, %p80
      %p82 = scmp.ne.s32.totalorder %s73, %s74
      %p83 = scmp.eq.s32.totalorder %s21, 0
      %p84 = por %p82, %p83
      %p85 = scmp.ne.s32.totalorder %s73, %s74
      %p86 = scmp.eq.s32.totalorder %s22, 1
      %p87 = por %p85, %p86
      %p89 = scmp.ne.s32.totalorder %s74, %s88
      %p90 = scmp.eq.s32.totalorder %s22, 0
      %p91 = por %p89, %p90
      %s93 = sadd.s32 %s92, 1
      %p96 = scmp.eq.s32.totalorder %s16, 1
      %p97 = scmp.ne.s32.totalorder %s92, %s94
      %p98 = scmp.eq.s32.totalorder %s16, 0
      %p99 = por %p97, %p98
      %p100 = scmp.ne.s32.totalorder %s92, %s94
      %p101 = scmp.eq.s32.totalorder %s21, 1
      %p102 = por %p100, %p101
      %p103 = scmp.ne.s32.totalorder %s94, %s95
      %p104 = scmp.eq.s32.totalorder %s21, 0
      %p105 = por %p103, %p104
      %p106 = scmp.ne.s32.totalorder %s94, %s95
      %p107 = scmp.eq.s32.totalorder %s22, 1
      %p108 = por %p106, %p107
      %p110 = scmp.ne.s32.totalorder %s95, %s109
      %p111 = scmp.eq.s32.totalorder %s22, 0
      %p112 = por %p110, %p111
      %s114 = sadd.s32 %s113, 1
      %p117 = scmp.eq.s32.totalorder %s16, 1
      %p118 = scmp.ne.s32.totalorder %s113, %s115
      %p119 = scmp.eq.s32.totalorder %s16, 0
      %p120 = por %p118, %p119
      %p121 = scmp.ne.s32.totalorder %s113, %s115
      %p122 = scmp.eq.s32.totalorder %s21, 1
      %p123 = por %p121, %p122
      %p124 = scmp.ne.s32.totalorder %s115, %s116
      %p125 = scmp.eq.s32.totalorder %s21, 0
      %p126 = por %p124, %p125
      %p127 = scmp.ne.s32.totalorder %s115, %s116
      %p128 = scmp.eq.s32.totalorder %s22, 1
      %p129 = por %p127, %p128
      %p131 = scmp.ne.s32.totalorder %s116, %s130
      %p132 = scmp.eq.s32.totalorder %s22, 0
      %p133 = por %p131, %p132
      %s134 = ssub.s32 %s16, %s23
      %p135 = scmp.eq.s32.totalorder %s134, 0
      %s137 = sadd.s32 %s136, 1
      %s138 = scalar_select %p135, %s136, %s137
      %p141 = pneg %p135
      %p142 = scmp.eq.s32.totalorder %s16, 1
      %p143 = por %p141, %p142
      %p144 = scmp.ne.s32.totalorder %s136, %s139
      %p145 = scmp.eq.s32.totalorder %s16, 0
      %p146 = por %p144, %p145
      %p147 = scmp.ne.s32.totalorder %s136, %s139
      %p148 = scmp.eq.s32.totalorder %s21, 1
      %p149 = por %p147, %p148
      %p150 = scmp.ne.s32.totalorder %s139, %s140
      %p151 = scmp.eq.s32.totalorder %s21, 0
      %p152 = por %p150, %p151
      %p153 = scmp.ne.s32.totalorder %s139, %s140
      %p154 = scmp.eq.s32.totalorder %s22, 1
      %p155 = por %p153, %p154
      %p157 = scmp.ne.s32.totalorder %s140, %s156
      %p158 = scmp.eq.s32.totalorder %s22, 0
      %p159 = por %p157, %p158
      %p160 = scmp.le.s32.totalorder 1, %s16
      %p161 = scmp.lt.s32.totalorder %s16, 3
      %p162 = pnand %p160, %p161
      %p163 = pneg %p162
      // Predicated region
      $region9: #{tpu_custom_call.1} parent=5 // pred_check
        _
      $region10: #{tpu_custom_call.1} parent=5 // pred_check_branch
        %165 = sbr.rel (%p162) target = $region12
      $region11: #{tpu_custom_call.1} parent=5 // pred_region
        %s166 = ssub.s32 %s16, 1
        // Predicated region
        $region13: #{tpu_custom_call.1} parent=11 // pred_check
          %p167 = pneg %p63
        $region14: #{tpu_custom_call.1} parent=11 // pred_check_branch
          %169 = sbr.rel (%p167) target = $region16
        $region15: #{tpu_custom_call.1} parent=11 // pred_region
          %171 = vsyncadd [#allocation4], 0
          %s173 = sshll.u32 %s1, 4
          %s174 = int_to_ptr.hbm [resolvable:$true] %s173
          %s175 = sshll.u32 [#allocation3], 4
          %s176 = int_to_ptr.vmem [resolvable:$true] %s175
          %178 = dma.hbm_to_vmem [thread:$0]  %s174, 64, %s176, [#allocation4]
        $region16: #{tpu_custom_call.1} parent=11 // pred_fallthru
          _
        // Predicated region
        $region17: #{tpu_custom_call.1} parent=11 // pred_check
          %p179 = pneg %p84
        $region18: #{tpu_custom_call.1} parent=11 // pred_check_branch
          %181 = sbr.rel (%p179) target = $region20
        $region19: #{tpu_custom_call.1} parent=11 // pred_region
          _
        $region20: #{tpu_custom_call.1} parent=11 // pred_fallthru
          _
        // Predicated region
        $region21: #{tpu_custom_call.1} parent=11 // pred_check
          %p182 = pneg %p105
        $region22: #{tpu_custom_call.1} parent=11 // pred_check_branch
          %184 = sbr.rel (%p182) target = $region24
        $region23: #{tpu_custom_call.1} parent=11 // pred_region
          _
        $region24: #{tpu_custom_call.1} parent=11 // pred_fallthru
          _
        // Predicated region
        $region25: #{tpu_custom_call.1} parent=11 // pred_check
          %p185 = pneg %p126
        $region26: #{tpu_custom_call.1} parent=11 // pred_check_branch
          %187 = sbr.rel (%p185) target = $region28
        $region27: #{tpu_custom_call.1} parent=11 // pred_region
          %189 = vsyncadd [#allocation7], 0
          %s190 = sshll.u32 %s4, 4
          %s191 = int_to_ptr.hbm [resolvable:$true] %s190
          %s192 = sshll.u32 [#allocation6], 4
          %s193 = int_to_ptr.vmem [resolvable:$true] %s192
          %198 = dma.hbm_to_vmem [thread:$0]  %s191, 512, %s193, [#allocation7], 256, 256, 16
        $region28: #{tpu_custom_call.1} parent=11 // pred_fallthru
          _
      $region12: #{tpu_custom_call.1} parent=5 // pred_fallthru
        _
      %p199 = scmp.lt.s32.totalorder %s16, 2
      // Predicated region
      $region29: #{tpu_custom_call.1} parent=5 // pred_check
        %p200 = pneg %p199
      $region30: #{tpu_custom_call.1} parent=5 // pred_check_branch
        %202 = sbr.rel (%p200) target = $region32
      $region31: #{tpu_custom_call.1} parent=5 // pred_region
        // Predicated region
        $region33: #{tpu_custom_call.1} parent=31 // pred_check
          %p203 = pneg %p36
        $region34: #{tpu_custom_call.1} parent=31 // pred_check_branch
          %205 = sbr.rel (%p203) target = $region36
        $region35: #{tpu_custom_call.1} parent=31 // pred_region
          %p206 = scmp.lt.s32.totalorder %s16, 1
          %s207 = scalar_select %p206, %s16, 1
          %s208 = smul.addr %s207, 2
          %s209 = smul.addr %s208, 4
          %s210 = scalar_lea.vmem %s0, %s209
        $region36: #{tpu_custom_call.1} parent=31 // pred_fallthru
          _
      $region32: #{tpu_custom_call.1} parent=5 // pred_fallthru
        _
      %p211 = scmp.le.s32.totalorder 1, %s16
      %p212 = scmp.lt.s32.totalorder %s16, 3
      %p213 = pnand %p211, %p212
      %p214 = pneg %p213
      // Predicated region
      $region37: #{tpu_custom_call.1} parent=5 // pred_check
        _
      $region38: #{tpu_custom_call.1} parent=5 // pred_check_branch
        %216 = sbr.rel (%p213) target = $region40
      $region39: #{tpu_custom_call.1} parent=5 // pred_region
        %s217 = ssub.s32 %s16, 1
        // Predicated region
        $region41: #{tpu_custom_call.1} parent=39 // pred_check
          %p218 = pneg %p63
        $region42: #{tpu_custom_call.1} parent=39 // pred_check_branch
          %220 = sbr.rel (%p218) target = $region44
        $region43: #{tpu_custom_call.1} parent=39 // pred_region
          %222 = dma.done [#allocation4], 64
        $region44: #{tpu_custom_call.1} parent=39 // pred_fallthru
          _
        // Predicated region
        $region45: #{tpu_custom_call.1} parent=39 // pred_check
          %p223 = pneg %p126
        $region46: #{tpu_custom_call.1} parent=39 // pred_check_branch
          %225 = sbr.rel (%p223) target = $region48
        $region47: #{tpu_custom_call.1} parent=39 // pred_region
          %227 = dma.done [#allocation7], 512
        $region48: #{tpu_custom_call.1} parent=39 // pred_fallthru
          _
        %p228 = scmp.lt.s32.totalorder %s21, 1
        %s229 = scalar_select %p228, %s21, 1
        %s230 = smul.addr %s229, 2
        %s231 = smul.addr %s230, 4
        %s232 = scalar_lea.vmem %s0, %s231
        %p233 = pneg %p42
        %p234 = pneg %p39
        %p235 = pneg %p63
        %p236 = pneg %p60
        %p237 = pneg %p84
        %p238 = pneg %p81
        %p239 = pneg %p105
        %p240 = pneg %p102
        %p241 = pneg %p126
        %p242 = pneg %p123
        %p243 = pneg %p152
        %p244 = pneg %p149
        %s245 = sand.u32 %s139, 1
        %s246 = scalar_lea.sflag [#allocation5], %s245
        %s247 = sand.u32 %s139, 1
        %s248 = smul.addr %s247, 16
        %s249 = scalar_lea.vmem [#allocation8], %s248
        %p250 = scmp.lt.s32.totalorder %s21, 1
        %s251 = scalar_select %p250, %s21, 1
        %s252 = smul.addr %s251, 2
        %s253 = smul.addr %s252, 4
        %s254 = scalar_lea.vmem %s0, %s253
        %v256 = vld [vmem:[#allocation6] sm:$0xff]
        %v257 = vld [vmem:[#allocation6 + $0x8] sm:$0xff]
        %v258 = vld [vmem:[#allocation6 + $0x10] sm:$0x1]
        %v259 = vld [vmem:[#allocation6 + $0x18] sm:$0x1]
        %v260 = vld [vmem:[%s254] sm:$0xff]
        %262 = vst [vmem:[#allocation1] ss:$2 sm:$0xff] %v260
        %v263 = vld.sshfl [vmem:[#allocation1] sm:$0xff pattern:$0x75316420]
        %v264 = vld.sshfl [vmem:[#allocation1 + $0x8] sm:$0xff pattern:$0x75316420]
        %267 = vrot.lane.b32.xlu0 %v263, 17
        %v268 = vpop.permute.xlu0 %267
        %269 = vrot.lane.b32.xlu0 %v264, 17
        %v270 = vpop.permute.xlu0 %269
        %v271 = vlaneseq
        %v272 = vand.u32 %v271, 127
        %vm273 = vcmp.lt.s32.totalorder %v272, 17
        %v274 = vsel %vm273, %v268, %v270
        %v275 = vsel %vm273, %v270, %v268
        %v276 = vperm.slane %v256, 0
        %v277 = vperm.slane %v257, 0
        %v278 = vmul.f32 %v275, %v276
        %v279 = vmul.f32 %v274, %v277
        %v280 = vpack.c.bf16 %v279, %v278
        %281 = vst [vmem:[#allocation2] sm:$0x33] %v280
        %282 = vst [vmem:[#allocation1] ss:$2 sm:$0xff] %v260
        %v283 = vld.sshfl [vmem:[#allocation1] sm:$0xff pattern:$0x75316420]
        %v284 = vld.sshfl [vmem:[#allocation1 + $0x8] sm:$0xff pattern:$0x75316420]
        %287 = vrot.lane.b32.xlu0 %v283, 16
        %v288 = vpop.permute.xlu0 %287
        %289 = vrot.lane.b32.xlu0 %v284, 16
        %v290 = vpop.permute.xlu0 %289
        %vm291 = vcmp.lt.s32.totalorder %v272, 16
        %v292 = vsel %vm291, %v288, %v290
        %v293 = vsel %vm291, %v290, %v288
        %v294 = vperm.slane %v256, 1
        %v295 = vperm.slane %v257, 1
        %v296 = vmul.f32 %v293, %v294
        %v297 = vmul.f32 %v292, %v295
        %v298 = vpack.c.bf16 %v297, %v296
        %v300 = vrot.slane %v298, 6
        %302 = vst [vmem:[#allocation2] sm:$0xcc] %v300
        %303 = vst [vmem:[#allocation1] ss:$2 sm:$0xff] %v260
        %v304 = vld.sshfl [vmem:[#allocation1] sm:$0xff pattern:$0x75316420]
        %v305 = vld.sshfl [vmem:[#allocation1 + $0x8] sm:$0xff pattern:$0x75316420]
        %308 = vrot.lane.b32.xlu0 %v304, 15
        %v309 = vpop.permute.xlu0 %308
        %310 = vrot.lane.b32.xlu0 %v305, 15
        %v311 = vpop.permute.xlu0 %310
        %vm312 = vcmp.lt.s32.totalorder %v272, 15
        %v313 = vsel %vm312, %v309, %v311
        %v314 = vsel %vm312, %v311, %v309
        %v315 = vperm.slane %v256, 2
        %v316 = vperm.slane %v257, 2
        %v317 = vmul.f32 %v314, %v315
        %v318 = vmul.f32 %v313, %v316
        %v319 = vpack.c.bf16 %v318, %v317
        %320 = vst [vmem:[#allocation2 + $0x8] sm:$0x33] %v319
        %321 = vst [vmem:[#allocation1] ss:$2 sm:$0xff] %v260
        %v322 = vld.sshfl [vmem:[#allocation1] sm:$0xff pattern:$0x75316420]
        %v323 = vld.sshfl [vmem:[#allocation1 + $0x8] sm:$0xff pattern:$0x75316420]
        %326 = vrot.lane.b32.xlu0 %v322, 1
        %v327 = vpop.permute.xlu0 %326
        %328 = vrot.lane.b32.xlu0 %v323, 1
        %v329 = vpop.permute.xlu0 %328
        %vm330 = vcmp.lt.s32.totalorder %v272, 1
        %v331 = vsel %vm330, %v327, %v329
        %v332 = vsel %vm330, %v329, %v327
        %v333 = vperm.slane %v256, 3
        %v334 = vperm.slane %v257, 3
        %v335 = vmul.f32 %v332, %v333
        %v336 = vmul.f32 %v331, %v334
        %v337 = vpack.c.bf16 %v336, %v335
        %v339 = vrot.slane %v337, 6
        %341 = vst [vmem:[#allocation2 + $0x8] sm:$0xcc] %v339
        %342 = vst [vmem:[#allocation1] ss:$2 sm:$0xff] %v260
        %v343 = vld.sshfl [vmem:[#allocation1] sm:$0xff pattern:$0x75316420]
        %v344 = vld.sshfl [vmem:[#allocation1 + $0x8] sm:$0xff pattern:$0x75316420]
        %v347 = vpack.c.bf16 %v344, %v343
        %348 = vst [vmem:[#allocation2 + $0x10] sm:$0x33] %v347
        %349 = vst [vmem:[#allocation1] ss:$2 sm:$0xff] %v260
        %v350 = vld.sshfl [vmem:[#allocation1] sm:$0xff pattern:$0x75316420]
        %v351 = vld.sshfl [vmem:[#allocation1 + $0x8] sm:$0xff pattern:$0x75316420]
        %354 = vrot.lane.b32.xlu0 %v350, 127
        %v355 = vpop.permute.xlu0 %354
        %356 = vrot.lane.b32.xlu0 %v351, 127
        %v357 = vpop.permute.xlu0 %356
        %vm358 = vcmp.lt.s32.totalorder %v272, 127
        %v359 = vsel %vm358, %v355, %v357
        %v360 = vsel %vm358, %v357, %v355
        %v361 = vperm.slane %v256, 5
        %v362 = vperm.slane %v257, 5
        %v363 = vmul.f32 %v359, %v361
        %v364 = vmul.f32 %v360, %v362
        %v365 = vpack.c.bf16 %v364, %v363
        %v367 = vrot.slane %v365, 6
        %369 = vst [vmem:[#allocation2 + $0x10] sm:$0xcc] %v367
        %370 = vst [vmem:[#allocation1] ss:$2 sm:$0xff] %v260
        %v371 = vld.sshfl [vmem:[#allocation1] sm:$0xff pattern:$0x75316420]
        %v372 = vld.sshfl [vmem:[#allocation1 + $0x8] sm:$0xff pattern:$0x75316420]
        %375 = vrot.lane.b32.xlu0 %v371, 113
        %v376 = vpop.permute.xlu0 %375
        %377 = vrot.lane.b32.xlu0 %v372, 113
        %v378 = vpop.permute.xlu0 %377
        %vm379 = vcmp.lt.s32.totalorder %v272, 113
        %v380 = vsel %vm379, %v376, %v378
        %v381 = vsel %vm379, %v378, %v376
        %v382 = vperm.slane %v256, 6
        %v383 = vperm.slane %v257, 6
        %v384 = vmul.f32 %v380, %v382
        %v385 = vmul.f32 %v381, %v383
        %v386 = vpack.c.bf16 %v385, %v384
        %387 = vst [vmem:[#allocation2 + $0x18] sm:$0x33] %v386
        %388 = vst [vmem:[#allocation1] ss:$2 sm:$0xff] %v260
        %v389 = vld.sshfl [vmem:[#allocation1] sm:$0xff pattern:$0x75316420]
        %v390 = vld.sshfl [vmem:[#allocation1 + $0x8] sm:$0xff pattern:$0x75316420]
        %393 = vrot.lane.b32.xlu0 %v389, 112
        %v394 = vpop.permute.xlu0 %393
        %395 = vrot.lane.b32.xlu0 %v390, 112
        %v396 = vpop.permute.xlu0 %395
        %vm397 = vcmp.lt.s32.totalorder %v272, 112
        %v398 = vsel %vm397, %v394, %v396
        %v399 = vsel %vm397, %v396, %v394
        %v400 = vperm.slane %v256, 7
        %v401 = vperm.slane %v257, 7
        %v402 = vmul.f32 %v398, %v400
        %v403 = vmul.f32 %v399, %v401
        %v404 = vpack.c.bf16 %v403, %v402
        %v406 = vrot.slane %v404, 6
        %408 = vst [vmem:[#allocation2 + $0x18] sm:$0xcc] %v406
        %409 = vst [vmem:[#allocation1] ss:$2 sm:$0xff] %v260
        %v410 = vld.sshfl [vmem:[#allocation1] sm:$0xff pattern:$0x75316420]
        %v411 = vld.sshfl [vmem:[#allocation1 + $0x8] sm:$0xff pattern:$0x75316420]
        %414 = vrot.lane.b32.xlu0 %v410, 111
        %v415 = vpop.permute.xlu0 %414
        %416 = vrot.lane.b32.xlu0 %v411, 111
        %v417 = vpop.permute.xlu0 %416
        %vm418 = vcmp.lt.s32.totalorder %v272, 111
        %v419 = vsel %vm418, %v415, %v417
        %v420 = vsel %vm418, %v417, %v415
        %v421 = vperm.slane %v258, 0
        %v422 = vperm.slane %v259, 0
        %v423 = vmul.f32 %v419, %v421
        %v424 = vmul.f32 %v420, %v422
        %v425 = vpack.c.bf16 %v424, %v423
        %426 = vst [vmem:[#allocation2 + $0x20] sm:$0x33] %v425
        %v427 = vld [vmem:[#allocation3] sm:$0xf]
        %v428 = vld [vmem:[#allocation2] sm:$0xff]
        %v429 = vld [vmem:[#allocation2 + $0x8] sm:$0xff]
        %v430 = vld [vmem:[#allocation2 + $0x10] sm:$0xff]
        %v431 = vld [vmem:[#allocation2 + $0x18] sm:$0xff]
        %v432 = vld [vmem:[#allocation2 + $0x20] sm:$0x33]
        %v438 = vunpack.c.l.b16 %v428
        %v439 = vunpack.c.h.b16 %v428
        %v440 = vunpack.c.l.b16 %v429
        %v441 = vunpack.c.h.b16 %v429
        %v442 = vunpack.c.l.b16 %v430
        %v443 = vunpack.c.h.b16 %v430
        %v444 = vunpack.c.l.b16 %v431
        %v445 = vunpack.c.h.b16 %v431
        %v446 = vunpack.c.l.b16 %v432
        %v447 = vunpack.c.h.b16 %v432
        %v448 = vpack.c.b16 %v440, %v438
        %v449 = vpack.c.b16 %v441, %v439
        %v450 = vpack.c.b16 %v444, %v442
        %v451 = vpack.c.b16 %v445, %v443
        %v452 = vpack.c.b16 %v446, %v446
        %v453 = vpack.c.b16 %v447, %v447
        %vm458 = vcmask 293888
        %v460 = vsel %vm458, %v427, 0
        %vm462 = vcmask 1041408
        %v464 = vsel %vm462, %v452, 0
        %v467 = vsel %vm462, %v453, 0
        %469 = vmatpush.bf16.msra.mxu0 0
        %470 = vmatpush.bf16.msra.mxu0 0
        %471 = vmatpush.bf16.msra.mxu0 0
        %472 = vmatpush.bf16.msra.mxu0 0
        %473 = vmatpush.bf16.msra.mxu0 0
        %474 = vmatpush.bf16.msra.mxu0 %v464
        %475 = vmatpush.bf16.msra.mxu0 %v450
        %476 = vmatpush.bf16.msra.mxu0 %v448
        %477 = vmatmul.bf16.gmra.mxu0 %v460
        %v478 = vpop.f32.mrf.mxu0
        %v479 = vadd.f32 0.0, %v478
        %v480 = vpop.f32.mrf.mxu0
        %481 = vdwg.mxu0
        %482 = vmatpush.bf16.msra.mxu0 0
        %483 = vmatpush.bf16.msra.mxu0 0
        %484 = vmatpush.bf16.msra.mxu0 0
        %485 = vmatpush.bf16.msra.mxu0 0
        %486 = vmatpush.bf16.msra.mxu0 0
        %487 = vmatpush.bf16.msra.mxu0 %v467
        %488 = vmatpush.bf16.msra.mxu0 %v451
        %489 = vmatpush.bf16.msra.mxu0 %v449
        %490 = vmatmul.bf16.gmra.mxu0 %v460
        %v491 = vpop.f32.mrf.mxu0
        %v492 = vadd.f32 0.0, %v491
        %v493 = vpop.f32.mrf.mxu0
        %494 = vdwg.mxu0
        %v495 = vld [vmem:[%s2] sm:$0xff]
        %497 = vset.pattern.permute.xlu0 0
        %498 = vperm.xlu0 %497, %v495
        %v499 = vpop.permute.xlu0 %498
        %v501 = vmul.f32 %v479, %v499
        %v502 = vmul.f32 %v492, %v499
        %v503 = vld [vmem:[%s3] sm:$0xff]
        %505 = vset.pattern.permute.xlu0 0
        %506 = vperm.xlu0 %505, %v503
        %v507 = vpop.permute.xlu0 %506
        %v509 = vadd.f32 %v501, %v507
        %v510 = vadd.f32 %v502, %v507
        %511 = vst [vmem:[%s249] sm:$0xff] %v509
        %512 = vst [vmem:[%s249 + $0x8] sm:$0xff] %v510
        %s513 = sand.u32 %s139, 1
        %s514 = scalar_lea.sflag [#allocation5], %s513
        %s515 = sand.u32 %s139, 1
        %s516 = smul.addr %s515, 16
        %s517 = scalar_lea.vmem [#allocation8], %s516
        // Predicated region
        $region49: #{tpu_custom_call.1} parent=39 // pred_check
          %p518 = pneg %p149
        $region50: #{tpu_custom_call.1} parent=39 // pred_check_branch
          %520 = sbr.rel (%p518) target = $region52
        $region51: #{tpu_custom_call.1} parent=39 // pred_region
          %522 = vsyncadd %s514, 0
          %s523 = smul.addr %s21, 2
          %s524 = smul.addr %s523, 8
          %s525 = scalar_lea.hbm %s5, %s524
          %s527 = sshll.u32 %s517, 4
          %s528 = int_to_ptr.vmem [resolvable:$true] %s527
          %s529 = sshll.u32 %s525, 4
          %s530 = int_to_ptr.hbm [resolvable:$true] %s529
          %532 = dma.vmem_to_hbm [thread:$0]  %s528, 256, %s530, %s514
        $region52: #{tpu_custom_call.1} parent=39 // pred_fallthru
          _
      $region40: #{tpu_custom_call.1} parent=5 // pred_fallthru
        _
      %p533 = scmp.le.s32.totalorder 2, %s16
      // Predicated region
      $region53: #{tpu_custom_call.1} parent=5 // pred_check
        %p534 = pneg %p533
      $region54: #{tpu_custom_call.1} parent=5 // pred_check_branch
        %536 = sbr.rel (%p534) target = $region56
      $region55: #{tpu_custom_call.1} parent=5 // pred_region
        %s537 = ssub.s32 %s16, 2
        // Predicated region
        $region57: #{tpu_custom_call.1} parent=55 // pred_check
          %p538 = pneg %p155
        $region58: #{tpu_custom_call.1} parent=55 // pred_check_branch
          %540 = sbr.rel (%p538) target = $region60
        $region59: #{tpu_custom_call.1} parent=55 // pred_region
          %s541 = sand.u32 %s140, 1
          %s542 = scalar_lea.sflag [#allocation5], %s541
          %s543 = sand.u32 %s140, 1
          %s544 = smul.addr %s543, 16
          %s545 = scalar_lea.vmem [#allocation8], %s544
          %547 = dma.done %s542, 256
        $region60: #{tpu_custom_call.1} parent=55 // pred_fallthru
          _
      $region56: #{tpu_custom_call.1} parent=5 // pred_fallthru
        _
    $region6: #{tpu_custom_call.1} parent=1 // loop_footer
      %s20 = sadd.s32 1, %s16
    $region7: #{tpu_custom_call.1} parent=1 // loop_footer_branch
      %15 = sbr.rel target = $region3
    $region8: #{tpu_custom_call.1} parent=1 // loop_exit
      _
    %548 = vsyncpa [#allocation4], 1
    %s549 = scalar_lea.sflag [#allocation4], 1
    %550 = vsyncpa %s549, 1
    %551 = vsyncpa [#allocation7], 1
    %552 = vsyncpa [#allocation5], 1
    %s553 = scalar_lea.sflag [#allocation5], 1
    %554 = vsyncpa %s553, 1

</llo_original>
